<compile_context>
chip_gen: v6e
topology: v6e:2x2x1
jax: 0.10.0
libtpu: 0.0.40
codegen_flags: <defaults>
</compile_context>

<pallas_src>
import functools

import jax
import jax.numpy as jnp
from jax.experimental import pallas as pl
from jax.experimental.pallas import tpu as pltpu


def _round_up(x, m):
    return ((x + m - 1) // m) * m


def _mlp_kernel(xT_ref, w_ref, b_ref, o_ref, *, n_layers, f_pad, out_dim):
    """Fused MLP in transposed (features, batch) layout.

    xT_ref: (f_pad, tn) bf16  — batch on lanes.
    w_ref:  (n_layers*f_pad, f_pad) bf16 — layer l weights (out, in) at rows
            [l*f_pad, (l+1)*f_pad), zero padded.
    b_ref:  (n_layers*f_pad, 1) f32 — layer l bias, zero padded.
    o_ref:  (out_dim, tn) f32 — softmax probabilities, batch on lanes.
    """
    h = xT_ref[...]  # (f_pad, tn) bf16

    def layer_wb(l):
        w = w_ref[pl.ds(l * f_pad, f_pad), :]   # static slice -> (f_pad, f_pad)
        b = b_ref[pl.ds(l * f_pad, f_pad), :]   # static slice -> (f_pad, 1)
        return w, b

    # Hidden layers: ReLU(W @ h + b); matmul operands bf16, accumulate f32.
    for l in range(n_layers - 1):
        w, b = layer_wb(l)
        z = jnp.dot(w, h, preferred_element_type=jnp.float32) + b
        h = jnp.maximum(z, 0.0).astype(jnp.bfloat16)

    # Final linear.
    w, b = layer_wb(n_layers - 1)
    logits = jnp.dot(w, h, preferred_element_type=jnp.float32) + b
    logits = logits[:out_dim, :]  # drop zero-padded output rows (value slice)

    # Softmax over the feature (sublane) axis == PyTorch Softmax(dim=1) on the
    # untransposed (N, out_dim) input.  Exact divide -> rows sum to 1.
    m = jnp.max(logits, axis=0, keepdims=True)
    e = jnp.exp(logits - m)
    denom = jnp.sum(e, axis=0, keepdims=True)
    o_ref[...] = (e / denom).astype(o_ref.dtype)


def _default_grid_steps():
    """One grid step per TensorCore: 2 on v7x, 1 on single-TC chips."""
    try:
        kind = jax.devices()[0].device_kind.lower()
        if "v7" in kind or "7x" in kind:
            return 2
        return 1
    except Exception:  # unknown platform -> prefer not to starve a 2-TC chip
        return 2


def background_field_mlp(x, params, *, grid_steps=None):
    """Run the fused MLP kernel.

    x: (N, in_dim) float array, or a list of such arrays (matches the PyTorch
       forward's list handling).  params: list of (W, b) with W stored (in, out).
    """
    if isinstance(x, (list, tuple)):
        return [background_field_mlp(xi, params, grid_steps=grid_steps) for xi in x]

    N, in_dim = x.shape
    n_layers = len(params)
    out_dim = params[-1][0].shape[1]

    # Common padded feature width (multiple of 16 for bf16 sublane packing).
    dims = [in_dim] + [W.shape[1] for (W, _) in params]
    f_pad = max(16, _round_up(max(dims), 16))

    # Batch tiling: g grid steps, each a lane-dense tile of tn (multiple of 128).
    g = _default_grid_steps() if grid_steps is None else int(grid_steps)
    g = max(1, min(g, pl.cdiv(N, 128)))
    tn = pl.cdiv(N, g * 128) * 128
    n_pad = g * tn

    # x transposed + zero-padded: (f_pad, n_pad) bf16, batch on lanes.
    xT = jnp.pad(x.T.astype(jnp.bfloat16),
                 ((0, f_pad - in_dim), (0, n_pad - N)))

    # One bf16 weight slab (per-layer (out, in), zero padded to (f_pad, f_pad))
    # and one f32 bias slab ((f_pad, 1) per layer).
    w_rows, b_rows = [], []
    for (W, b) in params:
        fi, fo = W.shape
        w_rows.append(jnp.pad(W.T.astype(jnp.bfloat16),
                              ((0, f_pad - fo), (0, f_pad - fi))))
        b_rows.append(jnp.pad(b.astype(jnp.float32).reshape(-1, 1),
                              ((0, f_pad - fo), (0, 0))))
    w_slab = jnp.concatenate(w_rows, axis=0)   # (n_layers*f_pad, f_pad) bf16
    b_slab = jnp.concatenate(b_rows, axis=0)   # (n_layers*f_pad, 1) f32

    kernel = functools.partial(_mlp_kernel, n_layers=n_layers,
                               f_pad=f_pad, out_dim=out_dim)

    # Advisory cost estimate for the XLA scheduler.
    flops = 2 * n_pad * sum(W.shape[0] * W.shape[1] for (W, _) in params)
    transcendentals = n_pad * out_dim                      # exp per logit
    bytes_accessed = (xT.size * 2 + w_slab.size * 2 + b_slab.size * 4
                      + out_dim * n_pad * 4)

    out_T = pl.pallas_call(
        kernel,
        out_shape=jax.ShapeDtypeStruct((out_dim, n_pad), jnp.float32),
        grid_spec=pltpu.PrefetchScalarGridSpec(
            num_scalar_prefetch=0,
            grid=(g,),
            in_specs=[
                pl.BlockSpec((f_pad, tn), lambda i: (0, i)),        # xT tile
                pl.BlockSpec(w_slab.shape, lambda i: (0, 0)),        # weights
                pl.BlockSpec(b_slab.shape, lambda i: (0, 0)),        # biases
            ],
            out_specs=pl.BlockSpec((out_dim, tn), lambda i: (0, i)),
        ),
        compiler_params=pltpu.CompilerParams(
            dimension_semantics=("parallel",)),
        cost_estimate=pl.CostEstimate(
            flops=flops,
            transcendentals=transcendentals,
            bytes_accessed=bytes_accessed),
    )(xT, w_slab, b_slab)

    # Back to the module's (N, out_dim) layout (transpose fused by XLA).
    return out_T[:, :N].T


def init_params(key, in_dim, planes):
    """Deterministic init mirroring nn.Linear shapes; weights stored as (in, out)."""
    dims = [in_dim] + list(planes)
    params = []
    for li in range(len(planes)):
        fan_in, fan_out = dims[li], dims[li + 1]
        key, kw, kb = jax.random.split(key, 3)
        bound = 1.0 / (fan_in ** 0.5)
        W = jax.random.uniform(kw, (fan_in, fan_out), jnp.float32, -bound, bound)
        b = jax.random.uniform(kb, (fan_out,), jnp.float32, -bound, bound)
        params.append((W, b))
    return params


def reference_mlp_f32(x, params):
    h = x
    for (W, b) in params[:-1]:
        h = jnp.maximum(h @ W + b, 0.0)
    W, b = params[-1]
    return jax.nn.softmax(h @ W + b, axis=1)


def reference_mlp_bf16(x, params):
    """Matches the kernel's numerics: bf16 dot operands, f32 accumulate/elementwise."""
    h = x.astype(jnp.bfloat16)
    for (W, b) in params[:-1]:
        z = jnp.dot(h, W.astype(jnp.bfloat16),
                    preferred_element_type=jnp.float32) + b
        h = jnp.maximum(z, 0.0).astype(jnp.bfloat16)
    W, b = params[-1]
    logits = jnp.dot(h, W.astype(jnp.bfloat16),
                     preferred_element_type=jnp.float32) + b
    return jax.nn.softmax(logits, axis=1)


if __name__ == "__main__":
    key = jax.random.PRNGKey(0)
    in_dim = 16
    planes = [32, 32, 32, 32, 32, 8]  # planes[0..4] hidden, planes[5] classes
    N = 384                           # exercises lane padding (pads to 512 @ 2 steps)

    kx, kp = jax.random.split(key)
    x = jax.random.normal(kx, (N, in_dim), jnp.float32)
    params = init_params(kp, in_dim, planes)

    ref_bf16 = reference_mlp_bf16(x, params)
    ref_f32 = reference_mlp_f32(x, params)

    # Auto grid (1 step per TensorCore).
    out = background_field_mlp(x, params)
    out = jax.block_until_ready(out)
    assert out.shape == (N, planes[-1])
    assert jnp.allclose(out, ref_bf16, atol=2e-3, rtol=2e-3), "mismatch vs bf16 reference"
    assert jnp.allclose(out, ref_f32, atol=3e-2, rtol=3e-2), "mismatch vs f32 reference"
    # Exact divide in the softmax -> rows sum to 1 tightly.
    assert jnp.allclose(jnp.sum(out, axis=1), jnp.ones((N,)), atol=1e-4)

    # Explicit 2-step grid (multi-tile batch path), same results.
    out2 = jax.block_until_ready(background_field_mlp(x, params, grid_steps=2))
    assert jnp.allclose(out2, ref_bf16, atol=2e-3, rtol=2e-3)

    # List-input path mirrors the PyTorch forward's list handling.
    outs = background_field_mlp([x[:128], x[128:]], params)
    outs = jax.block_until_ready(outs)
    assert len(outs) == 2 and outs[0].shape == (128, planes[-1])
    assert jnp.allclose(outs[0], ref_bf16[:128], atol=2e-3, rtol=2e-3)

    print("KERNEL_OK")
</pallas_src>

<mosaic_0001>
module attributes {stable_mosaic.version = 11 : i64} {
  func.func @_mlp_kernel(%arg0: i32, %arg1: memref<32x384xbf16, #tpu.memory_space<vmem>>, %arg2: memref<192x32xbf16, #tpu.memory_space<vmem>>, %arg3: memref<192x1xf32, #tpu.memory_space<vmem>>, %arg4: memref<8x384xf32, #tpu.memory_space<vmem>>) attributes {dimension_semantics = [#tpu.dimension_semantics<parallel>], iteration_bounds = array<i64: 1>, scalar_prefetch = 0 : i64, scratch_operands = 0 : i64, tpu.core_type = #tpu.core_type<tc>, window_params = [{transform_indices = @transform_0, window_bounds = array<i64: 32, 384>}, {pipeline_mode = #tpu.pipeline_mode<synchronous>, transform_indices = @transform_1, window_bounds = array<i64: 192, 32>}, {pipeline_mode = #tpu.pipeline_mode<synchronous>, transform_indices = @transform_2, window_bounds = array<i64: 192, 1>}, {transform_indices = @transform_3, window_bounds = array<i64: 8, 384>}]} {
    %c0 = arith.constant 0 : index
    %c0_0 = arith.constant 0 : index
    %0 = vector.load %arg1[%c0, %c0_0] : memref<32x384xbf16, #tpu.memory_space<vmem>>, vector<32x384xbf16>
    %c0_1 = arith.constant 0 : index
    %c0_2 = arith.constant 0 : index
    %1 = vector.load %arg2[%c0_1, %c0_2] : memref<192x32xbf16, #tpu.memory_space<vmem>>, vector<32x32xbf16>
    %c0_3 = arith.constant 0 : index
    %c0_4 = arith.constant 0 : index
    %2 = vector.load %arg3[%c0_3, %c0_4] : memref<192x1xf32, #tpu.memory_space<vmem>>, vector<32x1xf32>
    %cst = arith.constant dense<0.000000e+00> : vector<32x384xf32>
    %3 = tpu.matmul %1, %0, %cst {dimension_numbers = #tpu.dot_dimension_numbers<[1], [0], [0], [1], [0, 0, 1, 1], [], []>} : vector<32x32xbf16>, vector<32x384xbf16>, vector<32x384xf32> -> vector<32x384xf32>
    %4 = vector.broadcast %2 : vector<32x1xf32> to vector<32x384xf32>
    %5 = arith.addf %3, %4 : vector<32x384xf32>
    %cst_5 = arith.constant 0.000000e+00 : f32
    %6 = vector.broadcast %cst_5 : f32 to vector<32x384xf32>
    %7 = arith.maximumf %5, %6 : vector<32x384xf32>
    %8 = arith.truncf %7 : vector<32x384xf32> to vector<32x384xbf16>
    %c32 = arith.constant 32 : index
    %c0_6 = arith.constant 0 : index
    %9 = vector.load %arg2[%c32, %c0_6] : memref<192x32xbf16, #tpu.memory_space<vmem>>, vector<32x32xbf16>
    %c32_7 = arith.constant 32 : index
    %c0_8 = arith.constant 0 : index
    %10 = vector.load %arg3[%c32_7, %c0_8] : memref<192x1xf32, #tpu.memory_space<vmem>>, vector<32x1xf32>
    %cst_9 = arith.constant dense<0.000000e+00> : vector<32x384xf32>
    %11 = tpu.matmul %9, %8, %cst_9 {dimension_numbers = #tpu.dot_dimension_numbers<[1], [0], [0], [1], [0, 0, 1, 1], [], []>} : vector<32x32xbf16>, vector<32x384xbf16>, vector<32x384xf32> -> vector<32x384xf32>
    %12 = vector.broadcast %10 : vector<32x1xf32> to vector<32x384xf32>
    %13 = arith.addf %11, %12 : vector<32x384xf32>
    %cst_10 = arith.constant 0.000000e+00 : f32
    %14 = vector.broadcast %cst_10 : f32 to vector<32x384xf32>
    %15 = arith.maximumf %13, %14 : vector<32x384xf32>
    %16 = arith.truncf %15 : vector<32x384xf32> to vector<32x384xbf16>
    %c64 = arith.constant 64 : index
    %c0_11 = arith.constant 0 : index
    %17 = vector.load %arg2[%c64, %c0_11] : memref<192x32xbf16, #tpu.memory_space<vmem>>, vector<32x32xbf16>
    %c64_12 = arith.constant 64 : index
    %c0_13 = arith.constant 0 : index
    %18 = vector.load %arg3[%c64_12, %c0_13] : memref<192x1xf32, #tpu.memory_space<vmem>>, vector<32x1xf32>
    %cst_14 = arith.constant dense<0.000000e+00> : vector<32x384xf32>
    %19 = tpu.matmul %17, %16, %cst_14 {dimension_numbers = #tpu.dot_dimension_numbers<[1], [0], [0], [1], [0, 0, 1, 1], [], []>} : vector<32x32xbf16>, vector<32x384xbf16>, vector<32x384xf32> -> vector<32x384xf32>
    %20 = vector.broadcast %18 : vector<32x1xf32> to vector<32x384xf32>
    %21 = arith.addf %19, %20 : vector<32x384xf32>
    %cst_15 = arith.constant 0.000000e+00 : f32
    %22 = vector.broadcast %cst_15 : f32 to vector<32x384xf32>
    %23 = arith.maximumf %21, %22 : vector<32x384xf32>
    %24 = arith.truncf %23 : vector<32x384xf32> to vector<32x384xbf16>
    %c96 = arith.constant 96 : index
    %c0_16 = arith.constant 0 : index
    %25 = vector.load %arg2[%c96, %c0_16] : memref<192x32xbf16, #tpu.memory_space<vmem>>, vector<32x32xbf16>
    %c96_17 = arith.constant 96 : index
    %c0_18 = arith.constant 0 : index
    %26 = vector.load %arg3[%c96_17, %c0_18] : memref<192x1xf32, #tpu.memory_space<vmem>>, vector<32x1xf32>
    %cst_19 = arith.constant dense<0.000000e+00> : vector<32x384xf32>
    %27 = tpu.matmul %25, %24, %cst_19 {dimension_numbers = #tpu.dot_dimension_numbers<[1], [0], [0], [1], [0, 0, 1, 1], [], []>} : vector<32x32xbf16>, vector<32x384xbf16>, vector<32x384xf32> -> vector<32x384xf32>
    %28 = vector.broadcast %26 : vector<32x1xf32> to vector<32x384xf32>
    %29 = arith.addf %27, %28 : vector<32x384xf32>
    %cst_20 = arith.constant 0.000000e+00 : f32
    %30 = vector.broadcast %cst_20 : f32 to vector<32x384xf32>
    %31 = arith.maximumf %29, %30 : vector<32x384xf32>
    %32 = arith.truncf %31 : vector<32x384xf32> to vector<32x384xbf16>
    %c128 = arith.constant 128 : index
    %c0_21 = arith.constant 0 : index
    %33 = vector.load %arg2[%c128, %c0_21] : memref<192x32xbf16, #tpu.memory_space<vmem>>, vector<32x32xbf16>
    %c128_22 = arith.constant 128 : index
    %c0_23 = arith.constant 0 : index
    %34 = vector.load %arg3[%c128_22, %c0_23] : memref<192x1xf32, #tpu.memory_space<vmem>>, vector<32x1xf32>
    %cst_24 = arith.constant dense<0.000000e+00> : vector<32x384xf32>
    %35 = tpu.matmul %33, %32, %cst_24 {dimension_numbers = #tpu.dot_dimension_numbers<[1], [0], [0], [1], [0, 0, 1, 1], [], []>} : vector<32x32xbf16>, vector<32x384xbf16>, vector<32x384xf32> -> vector<32x384xf32>
    %36 = vector.broadcast %34 : vector<32x1xf32> to vector<32x384xf32>
    %37 = arith.addf %35, %36 : vector<32x384xf32>
    %cst_25 = arith.constant 0.000000e+00 : f32
    %38 = vector.broadcast %cst_25 : f32 to vector<32x384xf32>
    %39 = arith.maximumf %37, %38 : vector<32x384xf32>
    %40 = arith.truncf %39 : vector<32x384xf32> to vector<32x384xbf16>
    %c160 = arith.constant 160 : index
    %c0_26 = arith.constant 0 : index
    %41 = vector.load %arg2[%c160, %c0_26] : memref<192x32xbf16, #tpu.memory_space<vmem>>, vector<32x32xbf16>
    %c160_27 = arith.constant 160 : index
    %c0_28 = arith.constant 0 : index
    %42 = vector.load %arg3[%c160_27, %c0_28] : memref<192x1xf32, #tpu.memory_space<vmem>>, vector<32x1xf32>
    %cst_29 = arith.constant dense<0.000000e+00> : vector<32x384xf32>
    %43 = tpu.matmul %41, %40, %cst_29 {dimension_numbers = #tpu.dot_dimension_numbers<[1], [0], [0], [1], [0, 0, 1, 1], [], []>} : vector<32x32xbf16>, vector<32x384xbf16>, vector<32x384xf32> -> vector<32x384xf32>
    %44 = vector.broadcast %42 : vector<32x1xf32> to vector<32x384xf32>
    %45 = arith.addf %43, %44 : vector<32x384xf32>
    %46 = vector.extract_strided_slice %45 {offsets = [0, 0], sizes = [8, 384], strides = [1, 1]} : vector<32x384xf32> to vector<8x384xf32>
    %cst_30 = arith.constant dense<0xFF800000> : vector<384xf32>
    %47 = vector.multi_reduction <maximumf>, %46, %cst_30 [0] : vector<8x384xf32> to vector<384xf32>
    %48 = vector.shape_cast %47 : vector<384xf32> to vector<1x384xf32>
    %49 = vector.broadcast %48 : vector<1x384xf32> to vector<8x384xf32>
    %50 = arith.subf %46, %49 : vector<8x384xf32>
    %51 = math.exp %50 : vector<8x384xf32>
    %cst_31 = arith.constant dense<0.000000e+00> : vector<384xf32>
    %52 = vector.multi_reduction <add>, %51, %cst_31 [0] : vector<8x384xf32> to vector<384xf32>
    %53 = vector.shape_cast %52 : vector<384xf32> to vector<1x384xf32>
    %54 = vector.broadcast %53 : vector<1x384xf32> to vector<8x384xf32>
    %55 = arith.divf %51, %54 : vector<8x384xf32>
    %c0_32 = arith.constant 0 : index
    %c0_33 = arith.constant 0 : index
    %56 = vector.load %arg4[%c0_32, %c0_33] : memref<8x384xf32, #tpu.memory_space<vmem>>, vector<8x384xf32>
    tpu.vector_store %arg4[%c0_32, %c0_33], %55 {strides = array<i32>} : memref<8x384xf32, #tpu.memory_space<vmem>>, vector<8x384xf32>,
    return
  }
  func.func @transform_0(%arg0: i32) -> (i32, i32) {
    %c0_i32 = arith.constant 0 : i32
    %c0_i32_0 = arith.constant 0 : i32
    return %c0_i32, %arg0 : i32, i32
  }
  func.func @transform_1(%arg0: i32) -> (i32, i32) {
    %c0_i32 = arith.constant 0 : i32
    %c0_i32_0 = arith.constant 0 : i32
    %c0_i32_1 = arith.constant 0 : i32
    return %c0_i32, %c0_i32_0 : i32, i32
  }
  func.func @transform_2(%arg0: i32) -> (i32, i32) {
    %c0_i32 = arith.constant 0 : i32
    %c0_i32_0 = arith.constant 0 : i32
    %c0_i32_1 = arith.constant 0 : i32
    return %c0_i32, %c0_i32_0 : i32, i32
  }
  func.func @transform_3(%arg0: i32) -> (i32, i32) {
    %c0_i32 = arith.constant 0 : i32
    %c0_i32_0 = arith.constant 0 : i32
    return %c0_i32, %arg0 : i32, i32
  }
}

</mosaic_0001>

<llo_original>
// kernel: tpu_custom_call.1
$region0: #{tpu_custom_call.1}
  #allocation0 [shape = 'u32[]', space=smem, size = 0x4, offset = 0x4, fixed_abs, tag = 'smem constant byte address 0x4 - core index']
  #allocation1 [shape = 'u32[144,128]{1,0:T(1,128)}', space=vmem, size = 0x12000, scoped, tag = 'internal scratch']
  %s0 = inlined_call_operand.vmem [shape: bf16[32,384], index: 0, kind: input, shape index: {}]
  %s1 = inlined_call_operand.vmem [shape: bf16[192,32], index: 1, kind: input, shape index: {}]
  %s2 = inlined_call_operand.vmem [shape: f32[192,1], index: 2, kind: input, shape index: {}]
  %s3 = inlined_call_operand.hbm [shape: f32[8,384], index: 3, kind: output, shape index: {}]
  %s4 = sld [smem:[#allocation0]]
  $region22: #{tpu_custom_call.1} parent=0
    _
  %s6 = ssub.s32 1, %s4
  %s7 = scalar_select 0, %s6, %s4
  $region1: #{tpu_custom_call.1} parent=0
    #allocation2 [shape = 'u8[12288]{0}', space=vmem, size = 0x3000, scoped, tag = 'output window, operand 0, single buffered']
    #allocation3 [shape = 's32[1]{0}', space=sflag, size = 0x4, scoped, tag = 'scoped memory for tpu_custom_call.1']
    %8 = vsyncpa [#allocation3], 0
    // Predicated region
    $region2: #{tpu_custom_call.1} parent=1 // pred_check
      _
    $region3: #{tpu_custom_call.1} parent=1 // pred_check_branch
      %10 = sbr.rel (0) target = $region5
    $region4: #{tpu_custom_call.1} parent=1 // pred_region
      _
    $region5: #{tpu_custom_call.1} parent=1 // pred_fallthru
      _
    // Predicated region
    $region6: #{tpu_custom_call.1} parent=1 // pred_check
      _
    $region7: #{tpu_custom_call.1} parent=1 // pred_check_branch
      %12 = sbr.rel (0) target = $region9
    $region8: #{tpu_custom_call.1} parent=1 // pred_region
      _
    $region9: #{tpu_custom_call.1} parent=1 // pred_fallthru
      _
    // Predicated region
    $region10: #{tpu_custom_call.1} parent=1 // pred_check
      _
    $region11: #{tpu_custom_call.1} parent=1 // pred_check_branch
      %14 = sbr.rel (0) target = $region13
    $region12: #{tpu_custom_call.1} parent=1 // pred_region
      _
    $region13: #{tpu_custom_call.1} parent=1 // pred_fallthru
      _
    %v16 = vld [vmem:[%s0] sm:$0xff]
    %v17 = vld [vmem:[%s0 + $0x8] sm:$0xf]
    %v18 = vld [vmem:[%s0 + $0xc] sm:$0xff]
    %v19 = vld [vmem:[%s0 + $0x14] sm:$0xf]
    %v20 = vld [vmem:[%s0 + $0x18] sm:$0xff]
    %v21 = vld [vmem:[%s0 + $0x20] sm:$0xf]
    %v22 = vld [vmem:[%s0 + $0x24] sm:$0xff]
    %v23 = vld [vmem:[%s0 + $0x2c] sm:$0xf]
    %v24 = vld [vmem:[%s1] sm:$0xf]
    %v25 = vld [vmem:[%s1 + $0x4] sm:$0xf]
    %v26 = vld [vmem:[%s1 + $0x8] sm:$0xf]
    %v27 = vld [vmem:[%s1 + $0xc] sm:$0xf]
    %v28 = vld [vmem:[%s2] sm:$0xff]
    %v29 = vld [vmem:[%s2 + $0x8] sm:$0xff]
    %v30 = vld [vmem:[%s2 + $0x10] sm:$0xff]
    %v31 = vld [vmem:[%s2 + $0x18] sm:$0xff]
    %33 = vset.pattern.permute.xlu0 0
    %34 = vperm.xlu0 %33, %v28
    %v35 = vpop.permute.xlu0 %34
    %38 = vset.pattern.permute.xlu0 0
    %39 = vperm.xlu0 %38, %v29
    %v40 = vpop.permute.xlu0 %39
    %43 = vset.pattern.permute.xlu0 0
    %44 = vperm.xlu0 %43, %v30
    %v45 = vpop.permute.xlu0 %44
    %48 = vset.pattern.permute.xlu0 0
    %49 = vperm.xlu0 %48, %v31
    %v50 = vpop.permute.xlu0 %49
    %v56 = vunpack.c.l.b16 %v24
    %v57 = vunpack.c.l.b16 %v25
    %v58 = vunpack.c.l.b16 %v26
    %v59 = vunpack.c.l.b16 %v27
    %v60 = vpack.c.b16 %v57, %v56
    %v61 = vpack.c.b16 %v59, %v58
    %v70 = vunpack.c.l.b16 %v16
    %v71 = vunpack.c.h.b16 %v16
    %v72 = vunpack.c.l.b16 %v17
    %v73 = vunpack.c.l.b16 %v18
    %v74 = vunpack.c.h.b16 %v18
    %v75 = vunpack.c.l.b16 %v19
    %v76 = vunpack.c.l.b16 %v20
    %v77 = vunpack.c.h.b16 %v20
    %v78 = vunpack.c.l.b16 %v21
    %v79 = vunpack.c.l.b16 %v22
    %v80 = vunpack.c.h.b16 %v22
    %v81 = vunpack.c.l.b16 %v23
    %v82 = vpack.c.b16 %v73, %v70
    %v83 = vpack.c.b16 %v74, %v71
    %v84 = vpack.c.b16 %v75, %v72
    %v85 = vpack.c.b16 %v79, %v76
    %v86 = vpack.c.b16 %v80, %v77
    %v87 = vpack.c.b16 %v81, %v78
    %vm94 = vcmask 261120
    %v96 = vsel %vm94, %v60, 0
    %v99 = vsel %vm94, %v61, 0
    %101 = vmatprep.subr.bf16.mxu0 0
    %102 = vmatpush1.bf16.msra.mxu0 0
    %103 = vmatprep.subr.bf16.mxu0 0
    %104 = vmatpush1.bf16.msra.mxu0 0
    %105 = vmatprep.subr.bf16.mxu0 0
    %106 = vmatpush1.bf16.msra.mxu0 0
    %107 = vmatprep.subr.bf16.mxu0 0
    %108 = vmatpush1.bf16.msra.mxu0 0
    %109 = vmatprep.subr.bf16.mxu0 0
    %110 = vmatpush1.bf16.msra.mxu0 0
    %111 = vmatprep.subr.bf16.mxu0 0
    %112 = vmatpush1.bf16.msra.mxu0 0
    %113 = vmatprep.subr.bf16.mxu0 %v86
    %114 = vmatpush1.bf16.msra.mxu0 %v85
    %115 = vmatprep.subr.bf16.mxu0 %v83
    %116 = vmatpush1.bf16.msra.mxu0 %v82
    %117 = vmatprep.subr.bf16.mxu0 0
    %118 = vmatpush2.bf16.msra.mxu0 0
    %119 = vmatprep.subr.bf16.mxu0 0
    %120 = vmatpush2.bf16.msra.mxu0 0
    %121 = vmatprep.subr.bf16.mxu0 0
    %122 = vmatpush2.bf16.msra.mxu0 0
    %123 = vmatprep.subr.bf16.mxu0 0
    %124 = vmatpush2.bf16.msra.mxu0 0
    %125 = vmatprep.subr.bf16.mxu0 0
    %126 = vmatpush2.bf16.msra.mxu0 0
    %127 = vmatprep.subr.bf16.mxu0 0
    %128 = vmatpush2.bf16.msra.mxu0 0
    %129 = vmatprep.subr.bf16.mxu0 0
    %130 = vmatpush2.bf16.msra.mxu0 0
    %131 = vmatprep.subr.bf16.mxu0 0
    %132 = vmatpush2.bf16.msra.mxu0 0
    %133 = vmatprep.mubr.bf16.mxu0 0
    %134 = vmatmul.mubr.bf16.gmra.mxu0 %v96
    %v135 = vpop.f32.mrf.mxu0
    %v136 = vadd.f32 %v35, %v135
    %v137 = vpop.f32.mrf.mxu0
    %v138 = vadd.f32 %v35, %v137
    %v139 = vpop.f32.mrf.mxu0
    %v140 = vadd.f32 %v40, %v139
    %v141 = vpop.f32.mrf.mxu0
    %v142 = vadd.f32 %v40, %v141
    %143 = vmatprep.mubr.bf16.mxu0 0
    %144 = vmatmul.mubr.bf16.gmra.mxu0 %v99
    %v145 = vpop.f32.mrf.mxu0
    %v146 = vadd.f32 %v45, %v145
    %v147 = vpop.f32.mrf.mxu0
    %v148 = vadd.f32 %v45, %v147
    %v149 = vpop.f32.mrf.mxu0
    %v150 = vadd.f32 %v50, %v149
    %v151 = vpop.f32.mrf.mxu0
    %v152 = vadd.f32 %v50, %v151
    %153 = vdwg.mxu0
    %154 = vmatprep.subr.bf16.mxu0 0
    %155 = vmatpush1.bf16.msra.mxu0 0
    %156 = vmatprep.subr.bf16.mxu0 0
    %157 = vmatpush1.bf16.msra.mxu0 0
    %158 = vmatprep.subr.bf16.mxu0 0
    %159 = vmatpush1.bf16.msra.mxu0 0
    %160 = vmatprep.subr.bf16.mxu0 0
    %161 = vmatpush1.bf16.msra.mxu0 0
    %162 = vmatprep.subr.bf16.mxu0 0
    %163 = vmatpush1.bf16.msra.mxu0 0
    %164 = vmatprep.subr.bf16.mxu0 0
    %165 = vmatpush1.bf16.msra.mxu0 0
    %166 = vmatprep.subr.bf16.mxu0 0
    %167 = vmatpush1.bf16.msra.mxu0 %v87
    %168 = vmatprep.subr.bf16.mxu0 0
    %169 = vmatpush1.bf16.msra.mxu0 %v84
    %170 = vmatprep.subr.bf16.mxu0 0
    %171 = vmatpush2.bf16.msra.mxu0 0
    %172 = vmatprep.subr.bf16.mxu0 0
    %173 = vmatpush2.bf16.msra.mxu0 0
    %174 = vmatprep.subr.bf16.mxu0 0
    %175 = vmatpush2.bf16.msra.mxu0 0
    %176 = vmatprep.subr.bf16.mxu0 0
    %177 = vmatpush2.bf16.msra.mxu0 0
    %178 = vmatprep.subr.bf16.mxu0 0
    %179 = vmatpush2.bf16.msra.mxu0 0
    %180 = vmatprep.subr.bf16.mxu0 0
    %181 = vmatpush2.bf16.msra.mxu0 0
    %182 = vmatprep.subr.bf16.mxu0 0
    %183 = vmatpush2.bf16.msra.mxu0 0
    %184 = vmatprep.subr.bf16.mxu0 0
    %185 = vmatpush2.bf16.msra.mxu0 0
    %186 = vmatprep.mubr.bf16.mxu0 0
    %187 = vmatmul.mubr.bf16.gmra.mxu0 %v96
    %v188 = vpop.f32.mrf.mxu0
    %v189 = vadd.f32 %v35, %v188
    %v190 = vpop.f32.mrf.mxu0
    %v191 = vpop.f32.mrf.mxu0
    %v192 = vadd.f32 %v40, %v191
    %v193 = vpop.f32.mrf.mxu0
    %194 = vmatprep.mubr.bf16.mxu0 0
    %195 = vmatmul.mubr.bf16.gmra.mxu0 %v99
    %v196 = vpop.f32.mrf.mxu0
    %v197 = vadd.f32 %v45, %v196
    %v198 = vpop.f32.mrf.mxu0
    %v199 = vpop.f32.mrf.mxu0
    %v200 = vadd.f32 %v50, %v199
    %v201 = vpop.f32.mrf.mxu0
    %202 = vdwg.mxu0
    %v203 = vmax.f32 %v136, 0.0
    %v204 = vmax.f32 %v138, 0.0
    %v205 = vmax.f32 %v189, 0.0
    %v206 = vmax.f32 %v140, 0.0
    %v207 = vmax.f32 %v142, 0.0
    %v208 = vmax.f32 %v192, 0.0
    %v209 = vmax.f32 %v146, 0.0
    %v210 = vmax.f32 %v148, 0.0
    %v211 = vmax.f32 %v197, 0.0
    %v212 = vmax.f32 %v150, 0.0
    %v213 = vmax.f32 %v152, 0.0
    %v214 = vmax.f32 %v200, 0.0
    %v215 = vpack.c.bf16 %v206, %v203
    %v216 = vpack.c.bf16 %v207, %v204
    %v217 = vpack.c.bf16 %v208, %v205
    %v218 = vpack.c.bf16 %v212, %v209
    %v219 = vpack.c.bf16 %v213, %v210
    %v220 = vpack.c.bf16 %v214, %v211
    %v221 = vld [vmem:[%s1 + $0x10] sm:$0xf]
    %v222 = vld [vmem:[%s1 + $0x14] sm:$0xf]
    %v223 = vld [vmem:[%s1 + $0x18] sm:$0xf]
    %v224 = vld [vmem:[%s1 + $0x1c] sm:$0xf]
    %v225 = vld [vmem:[%s2 + $0x20] sm:$0xff]
    %v226 = vld [vmem:[%s2 + $0x28] sm:$0xff]
    %v227 = vld [vmem:[%s2 + $0x30] sm:$0xff]
    %v228 = vld [vmem:[%s2 + $0x38] sm:$0xff]
    %230 = vset.pattern.permute.xlu0 0
    %231 = vperm.xlu0 %230, %v225
    %v232 = vpop.permute.xlu0 %231
    %235 = vset.pattern.permute.xlu0 0
    %236 = vperm.xlu0 %235, %v226
    %v237 = vpop.permute.xlu0 %236
    %240 = vset.pattern.permute.xlu0 0
    %241 = vperm.xlu0 %240, %v227
    %v242 = vpop.permute.xlu0 %241
    %245 = vset.pattern.permute.xlu0 0
    %246 = vperm.xlu0 %245, %v228
    %v247 = vpop.permute.xlu0 %246
    %v253 = vunpack.c.l.b16 %v221
    %v254 = vunpack.c.l.b16 %v222
    %v255 = vunpack.c.l.b16 %v223
    %v256 = vunpack.c.l.b16 %v224
    %v257 = vpack.c.b16 %v254, %v253
    %v258 = vpack.c.b16 %v256, %v255
    %v260 = vsel %vm94, %v257, 0
    %v263 = vsel %vm94, %v258, 0
    %265 = vmatprep.subr.bf16.mxu0 0
    %266 = vmatpush1.bf16.msra.mxu0 0
    %267 = vmatprep.subr.bf16.mxu0 0
    %268 = vmatpush1.bf16.msra.mxu0 0
    %269 = vmatprep.subr.bf16.mxu0 0
    %270 = vmatpush1.bf16.msra.mxu0 0
    %271 = vmatprep.subr.bf16.mxu0 0
    %272 = vmatpush1.bf16.msra.mxu0 0
    %273 = vmatprep.subr.bf16.mxu0 0
    %274 = vmatpush1.bf16.msra.mxu0 0
    %275 = vmatprep.subr.bf16.mxu0 0
    %276 = vmatpush1.bf16.msra.mxu0 0
    %277 = vmatprep.subr.bf16.mxu0 %v219
    %278 = vmatpush1.bf16.msra.mxu0 %v218
    %279 = vmatprep.subr.bf16.mxu0 %v216
    %280 = vmatpush1.bf16.msra.mxu0 %v215
    %281 = vmatprep.subr.bf16.mxu0 0
    %282 = vmatpush2.bf16.msra.mxu0 0
    %283 = vmatprep.subr.bf16.mxu0 0
    %284 = vmatpush2.bf16.msra.mxu0 0
    %285 = vmatprep.subr.bf16.mxu0 0
    %286 = vmatpush2.bf16.msra.mxu0 0
    %287 = vmatprep.subr.bf16.mxu0 0
    %288 = vmatpush2.bf16.msra.mxu0 0
    %289 = vmatprep.subr.bf16.mxu0 0
    %290 = vmatpush2.bf16.msra.mxu0 0
    %291 = vmatprep.subr.bf16.mxu0 0
    %292 = vmatpush2.bf16.msra.mxu0 0
    %293 = vmatprep.subr.bf16.mxu0 0
    %294 = vmatpush2.bf16.msra.mxu0 0
    %295 = vmatprep.subr.bf16.mxu0 0
    %296 = vmatpush2.bf16.msra.mxu0 0
    %297 = vmatprep.mubr.bf16.mxu0 0
    %298 = vmatmul.mubr.bf16.gmra.mxu0 %v260
    %v299 = vpop.f32.mrf.mxu0
    %v300 = vadd.f32 %v232, %v299
    %v301 = vpop.f32.mrf.mxu0
    %v302 = vadd.f32 %v232, %v301
    %v303 = vpop.f32.mrf.mxu0
    %v304 = vadd.f32 %v237, %v303
    %v305 = vpop.f32.mrf.mxu0
    %v306 = vadd.f32 %v237, %v305
    %307 = vmatprep.mubr.bf16.mxu0 0
    %308 = vmatmul.mubr.bf16.gmra.mxu0 %v263
    %v309 = vpop.f32.mrf.mxu0
    %v310 = vadd.f32 %v242, %v309
    %v311 = vpop.f32.mrf.mxu0
    %v312 = vadd.f32 %v242, %v311
    %v313 = vpop.f32.mrf.mxu0
    %v314 = vadd.f32 %v247, %v313
    %v315 = vpop.f32.mrf.mxu0
    %v316 = vadd.f32 %v247, %v315
    %317 = vdwg.mxu0
    %318 = vmatprep.subr.bf16.mxu0 0
    %319 = vmatpush1.bf16.msra.mxu0 0
    %320 = vmatprep.subr.bf16.mxu0 0
    %321 = vmatpush1.bf16.msra.mxu0 0
    %322 = vmatprep.subr.bf16.mxu0 0
    %323 = vmatpush1.bf16.msra.mxu0 0
    %324 = vmatprep.subr.bf16.mxu0 0
    %325 = vmatpush1.bf16.msra.mxu0 0
    %326 = vmatprep.subr.bf16.mxu0 0
    %327 = vmatpush1.bf16.msra.mxu0 0
    %328 = vmatprep.subr.bf16.mxu0 0
    %329 = vmatpush1.bf16.msra.mxu0 0
    %330 = vmatprep.subr.bf16.mxu0 0
    %331 = vmatpush1.bf16.msra.mxu0 %v220
    %332 = vmatprep.subr.bf16.mxu0 0
    %333 = vmatpush1.bf16.msra.mxu0 %v217
    %334 = vmatprep.subr.bf16.mxu0 0
    %335 = vmatpush2.bf16.msra.mxu0 0
    %336 = vmatprep.subr.bf16.mxu0 0
    %337 = vmatpush2.bf16.msra.mxu0 0
    %338 = vmatprep.subr.bf16.mxu0 0
    %339 = vmatpush2.bf16.msra.mxu0 0
    %340 = vmatprep.subr.bf16.mxu0 0
    %341 = vmatpush2.bf16.msra.mxu0 0
    %342 = vmatprep.subr.bf16.mxu0 0
    %343 = vmatpush2.bf16.msra.mxu0 0
    %344 = vmatprep.subr.bf16.mxu0 0
    %345 = vmatpush2.bf16.msra.mxu0 0
    %346 = vmatprep.subr.bf16.mxu0 0
    %347 = vmatpush2.bf16.msra.mxu0 0
    %348 = vmatprep.subr.bf16.mxu0 0
    %349 = vmatpush2.bf16.msra.mxu0 0
    %350 = vmatprep.mubr.bf16.mxu0 0
    %351 = vmatmul.mubr.bf16.gmra.mxu0 %v260
    %v352 = vpop.f32.mrf.mxu0
    %v353 = vadd.f32 %v232, %v352
    %v354 = vpop.f32.mrf.mxu0
    %v355 = vpop.f32.mrf.mxu0
    %v356 = vadd.f32 %v237, %v355
    %v357 = vpop.f32.mrf.mxu0
    %358 = vmatprep.mubr.bf16.mxu0 0
    %359 = vmatmul.mubr.bf16.gmra.mxu0 %v263
    %v360 = vpop.f32.mrf.mxu0
    %v361 = vadd.f32 %v242, %v360
    %v362 = vpop.f32.mrf.mxu0
    %v363 = vpop.f32.mrf.mxu0
    %v364 = vadd.f32 %v247, %v363
    %v365 = vpop.f32.mrf.mxu0
    %366 = vdwg.mxu0
    %v367 = vmax.f32 %v300, 0.0
    %v368 = vmax.f32 %v302, 0.0
    %v369 = vmax.f32 %v353, 0.0
    %v370 = vmax.f32 %v304, 0.0
    %v371 = vmax.f32 %v306, 0.0
    %v372 = vmax.f32 %v356, 0.0
    %v373 = vmax.f32 %v310, 0.0
    %v374 = vmax.f32 %v312, 0.0
    %v375 = vmax.f32 %v361, 0.0
    %v376 = vmax.f32 %v314, 0.0
    %v377 = vmax.f32 %v316, 0.0
    %v378 = vmax.f32 %v364, 0.0
    %v379 = vpack.c.bf16 %v370, %v367
    %v380 = vpack.c.bf16 %v371, %v368
    %v381 = vpack.c.bf16 %v372, %v369
    %v382 = vpack.c.bf16 %v376, %v373
    %v383 = vpack.c.bf16 %v377, %v374
    %v384 = vpack.c.bf16 %v378, %v375
    %v385 = vld [vmem:[%s1 + $0x20] sm:$0xf]
    %v386 = vld [vmem:[%s1 + $0x24] sm:$0xf]
    %v387 = vld [vmem:[%s1 + $0x28] sm:$0xf]
    %v388 = vld [vmem:[%s1 + $0x2c] sm:$0xf]
    %v389 = vld [vmem:[%s2 + $0x40] sm:$0xff]
    %v390 = vld [vmem:[%s2 + $0x48] sm:$0xff]
    %v391 = vld [vmem:[%s2 + $0x50] sm:$0xff]
    %v392 = vld [vmem:[%s2 + $0x58] sm:$0xff]
    %394 = vset.pattern.permute.xlu0 0
    %395 = vperm.xlu0 %394, %v389
    %v396 = vpop.permute.xlu0 %395
    %399 = vset.pattern.permute.xlu0 0
    %400 = vperm.xlu0 %399, %v390
    %v401 = vpop.permute.xlu0 %400
    %404 = vset.pattern.permute.xlu0 0
    %405 = vperm.xlu0 %404, %v391
    %v406 = vpop.permute.xlu0 %405
    %409 = vset.pattern.permute.xlu0 0
    %410 = vperm.xlu0 %409, %v392
    %v411 = vpop.permute.xlu0 %410
    %v417 = vunpack.c.l.b16 %v385
    %v418 = vunpack.c.l.b16 %v386
    %v419 = vunpack.c.l.b16 %v387
    %v420 = vunpack.c.l.b16 %v388
    %v421 = vpack.c.b16 %v418, %v417
    %v422 = vpack.c.b16 %v420, %v419
    %v424 = vsel %vm94, %v421, 0
    %v427 = vsel %vm94, %v422, 0
    %429 = vmatprep.subr.bf16.mxu0 0
    %430 = vmatpush1.bf16.msra.mxu0 0
    %431 = vmatprep.subr.bf16.mxu0 0
    %432 = vmatpush1.bf16.msra.mxu0 0
    %433 = vmatprep.subr.bf16.mxu0 0
    %434 = vmatpush1.bf16.msra.mxu0 0
    %435 = vmatprep.subr.bf16.mxu0 0
    %436 = vmatpush1.bf16.msra.mxu0 0
    %437 = vmatprep.subr.bf16.mxu0 0
    %438 = vmatpush1.bf16.msra.mxu0 0
    %439 = vmatprep.subr.bf16.mxu0 0
    %440 = vmatpush1.bf16.msra.mxu0 0
    %441 = vmatprep.subr.bf16.mxu0 %v383
    %442 = vmatpush1.bf16.msra.mxu0 %v382
    %443 = vmatprep.subr.bf16.mxu0 %v380
    %444 = vmatpush1.bf16.msra.mxu0 %v379
    %445 = vmatprep.subr.bf16.mxu0 0
    %446 = vmatpush2.bf16.msra.mxu0 0
    %447 = vmatprep.subr.bf16.mxu0 0
    %448 = vmatpush2.bf16.msra.mxu0 0
    %449 = vmatprep.subr.bf16.mxu0 0
    %450 = vmatpush2.bf16.msra.mxu0 0
    %451 = vmatprep.subr.bf16.mxu0 0
    %452 = vmatpush2.bf16.msra.mxu0 0
    %453 = vmatprep.subr.bf16.mxu0 0
    %454 = vmatpush2.bf16.msra.mxu0 0
    %455 = vmatprep.subr.bf16.mxu0 0
    %456 = vmatpush2.bf16.msra.mxu0 0
    %457 = vmatprep.subr.bf16.mxu0 0
    %458 = vmatpush2.bf16.msra.mxu0 0
    %459 = vmatprep.subr.bf16.mxu0 0
    %460 = vmatpush2.bf16.msra.mxu0 0
    %461 = vmatprep.mubr.bf16.mxu0 0
    %462 = vmatmul.mubr.bf16.gmra.mxu0 %v424
    %v463 = vpop.f32.mrf.mxu0
    %v464 = vadd.f32 %v396, %v463
    %v465 = vpop.f32.mrf.mxu0
    %v466 = vadd.f32 %v396, %v465
    %v467 = vpop.f32.mrf.mxu0
    %v468 = vadd.f32 %v401, %v467
    %v469 = vpop.f32.mrf.mxu0
    %v470 = vadd.f32 %v401, %v469
    %471 = vmatprep.mubr.bf16.mxu0 0
    %472 = vmatmul.mubr.bf16.gmra.mxu0 %v427
    %v473 = vpop.f32.mrf.mxu0
    %v474 = vadd.f32 %v406, %v473
    %v475 = vpop.f32.mrf.mxu0
    %v476 = vadd.f32 %v406, %v475
    %v477 = vpop.f32.mrf.mxu0
    %v478 = vadd.f32 %v411, %v477
    %v479 = vpop.f32.mrf.mxu0
    %v480 = vadd.f32 %v411, %v479
    %481 = vdwg.mxu0
    %482 = vmatprep.subr.bf16.mxu0 0
    %483 = vmatpush1.bf16.msra.mxu0 0
    %484 = vmatprep.subr.bf16.mxu0 0
    %485 = vmatpush1.bf16.msra.mxu0 0
    %486 = vmatprep.subr.bf16.mxu0 0
    %487 = vmatpush1.bf16.msra.mxu0 0
    %488 = vmatprep.subr.bf16.mxu0 0
    %489 = vmatpush1.bf16.msra.mxu0 0
    %490 = vmatprep.subr.bf16.mxu0 0
    %491 = vmatpush1.bf16.msra.mxu0 0
    %492 = vmatprep.subr.bf16.mxu0 0
    %493 = vmatpush1.bf16.msra.mxu0 0
    %494 = vmatprep.subr.bf16.mxu0 0
    %495 = vmatpush1.bf16.msra.mxu0 %v384
    %496 = vmatprep.subr.bf16.mxu0 0
    %497 = vmatpush1.bf16.msra.mxu0 %v381
    %498 = vmatprep.subr.bf16.mxu0 0
    %499 = vmatpush2.bf16.msra.mxu0 0
    %500 = vmatprep.subr.bf16.mxu0 0
    %501 = vmatpush2.bf16.msra.mxu0 0
    %502 = vmatprep.subr.bf16.mxu0 0
    %503 = vmatpush2.bf16.msra.mxu0 0
    %504 = vmatprep.subr.bf16.mxu0 0
    %505 = vmatpush2.bf16.msra.mxu0 0
    %506 = vmatprep.subr.bf16.mxu0 0
    %507 = vmatpush2.bf16.msra.mxu0 0
    %508 = vmatprep.subr.bf16.mxu0 0
    %509 = vmatpush2.bf16.msra.mxu0 0
    %510 = vmatprep.subr.bf16.mxu0 0
    %511 = vmatpush2.bf16.msra.mxu0 0
    %512 = vmatprep.subr.bf16.mxu0 0
    %513 = vmatpush2.bf16.msra.mxu0 0
    %514 = vmatprep.mubr.bf16.mxu0 0
    %515 = vmatmul.mubr.bf16.gmra.mxu0 %v424
    %v516 = vpop.f32.mrf.mxu0
    %v517 = vadd.f32 %v396, %v516
    %v518 = vpop.f32.mrf.mxu0
    %v519 = vpop.f32.mrf.mxu0
    %v520 = vadd.f32 %v401, %v519
    %v521 = vpop.f32.mrf.mxu0
    %522 = vmatprep.mubr.bf16.mxu0 0
    %523 = vmatmul.mubr.bf16.gmra.mxu0 %v427
    %v524 = vpop.f32.mrf.mxu0
    %v525 = vadd.f32 %v406, %v524
    %v526 = vpop.f32.mrf.mxu0
    %v527 = vpop.f32.mrf.mxu0
    %v528 = vadd.f32 %v411, %v527
    %v529 = vpop.f32.mrf.mxu0
    %530 = vdwg.mxu0
    %v531 = vmax.f32 %v464, 0.0
    %v532 = vmax.f32 %v466, 0.0
    %v533 = vmax.f32 %v517, 0.0
    %v534 = vmax.f32 %v468, 0.0
    %v535 = vmax.f32 %v470, 0.0
    %v536 = vmax.f32 %v520, 0.0
    %v537 = vmax.f32 %v474, 0.0
    %v538 = vmax.f32 %v476, 0.0
    %v539 = vmax.f32 %v525, 0.0
    %v540 = vmax.f32 %v478, 0.0
    %v541 = vmax.f32 %v480, 0.0
    %v542 = vmax.f32 %v528, 0.0
    %v543 = vpack.c.bf16 %v534, %v531
    %v544 = vpack.c.bf16 %v535, %v532
    %v545 = vpack.c.bf16 %v536, %v533
    %v546 = vpack.c.bf16 %v540, %v537
    %v547 = vpack.c.bf16 %v541, %v538
    %v548 = vpack.c.bf16 %v542, %v539
    %v549 = vld [vmem:[%s1 + $0x30] sm:$0xf]
    %v550 = vld [vmem:[%s1 + $0x34] sm:$0xf]
    %v551 = vld [vmem:[%s1 + $0x38] sm:$0xf]
    %v552 = vld [vmem:[%s1 + $0x3c] sm:$0xf]
    %v553 = vld [vmem:[%s2 + $0x60] sm:$0xff]
    %v554 = vld [vmem:[%s2 + $0x68] sm:$0xff]
    %v555 = vld [vmem:[%s2 + $0x70] sm:$0xff]
    %v556 = vld [vmem:[%s2 + $0x78] sm:$0xff]
    %558 = vset.pattern.permute.xlu0 0
    %559 = vperm.xlu0 %558, %v553
    %v560 = vpop.permute.xlu0 %559
    %563 = vset.pattern.permute.xlu0 0
    %564 = vperm.xlu0 %563, %v554
    %v565 = vpop.permute.xlu0 %564
    %568 = vset.pattern.permute.xlu0 0
    %569 = vperm.xlu0 %568, %v555
    %v570 = vpop.permute.xlu0 %569
    %573 = vset.pattern.permute.xlu0 0
    %574 = vperm.xlu0 %573, %v556
    %v575 = vpop.permute.xlu0 %574
    %v581 = vunpack.c.l.b16 %v549
    %v582 = vunpack.c.l.b16 %v550
    %v583 = vunpack.c.l.b16 %v551
    %v584 = vunpack.c.l.b16 %v552
    %v585 = vpack.c.b16 %v582, %v581
    %v586 = vpack.c.b16 %v584, %v583
    %v588 = vsel %vm94, %v585, 0
    %v591 = vsel %vm94, %v586, 0
    %593 = vmatprep.subr.bf16.mxu0 0
    %594 = vmatpush1.bf16.msra.mxu0 0
    %595 = vmatprep.subr.bf16.mxu0 0
    %596 = vmatpush1.bf16.msra.mxu0 0
    %597 = vmatprep.subr.bf16.mxu0 0
    %598 = vmatpush1.bf16.msra.mxu0 0
    %599 = vmatprep.subr.bf16.mxu0 0
    %600 = vmatpush1.bf16.msra.mxu0 0
    %601 = vmatprep.subr.bf16.mxu0 0
    %602 = vmatpush1.bf16.msra.mxu0 0
    %603 = vmatprep.subr.bf16.mxu0 0
    %604 = vmatpush1.bf16.msra.mxu0 0
    %605 = vmatprep.subr.bf16.mxu0 %v547
    %606 = vmatpush1.bf16.msra.mxu0 %v546
    %607 = vmatprep.subr.bf16.mxu0 %v544
    %608 = vmatpush1.bf16.msra.mxu0 %v543
    %609 = vmatprep.subr.bf16.mxu0 0
    %610 = vmatpush2.bf16.msra.mxu0 0
    %611 = vmatprep.subr.bf16.mxu0 0
    %612 = vmatpush2.bf16.msra.mxu0 0
    %613 = vmatprep.subr.bf16.mxu0 0
    %614 = vmatpush2.bf16.msra.mxu0 0
    %615 = vmatprep.subr.bf16.mxu0 0
    %616 = vmatpush2.bf16.msra.mxu0 0
    %617 = vmatprep.subr.bf16.mxu0 0
    %618 = vmatpush2.bf16.msra.mxu0 0
    %619 = vmatprep.subr.bf16.mxu0 0
    %620 = vmatpush2.bf16.msra.mxu0 0
    %621 = vmatprep.subr.bf16.mxu0 0
    %622 = vmatpush2.bf16.msra.mxu0 0
    %623 = vmatprep.subr.bf16.mxu0 0
    %624 = vmatpush2.bf16.msra.mxu0 0
    %625 = vmatprep.mubr.bf16.mxu0 0
    %626 = vmatmul.mubr.bf16.gmra.mxu0 %v588
    %v627 = vpop.f32.mrf.mxu0
    %v628 = vadd.f32 %v560, %v627
    %v629 = vpop.f32.mrf.mxu0
    %v630 = vadd.f32 %v560, %v629
    %v631 = vpop.f32.mrf.mxu0
    %v632 = vadd.f32 %v565, %v631
    %v633 = vpop.f32.mrf.mxu0
    %v634 = vadd.f32 %v565, %v633
    %635 = vmatprep.mubr.bf16.mxu0 0
    %636 = vmatmul.mubr.bf16.gmra.mxu0 %v591
    %v637 = vpop.f32.mrf.mxu0
    %v638 = vadd.f32 %v570, %v637
    %v639 = vpop.f32.mrf.mxu0
    %v640 = vadd.f32 %v570, %v639
    %v641 = vpop.f32.mrf.mxu0
    %v642 = vadd.f32 %v575, %v641
    %v643 = vpop.f32.mrf.mxu0
    %v644 = vadd.f32 %v575, %v643
    %645 = vdwg.mxu0
    %646 = vmatprep.subr.bf16.mxu0 0
    %647 = vmatpush1.bf16.msra.mxu0 0
    %648 = vmatprep.subr.bf16.mxu0 0
    %649 = vmatpush1.bf16.msra.mxu0 0
    %650 = vmatprep.subr.bf16.mxu0 0
    %651 = vmatpush1.bf16.msra.mxu0 0
    %652 = vmatprep.subr.bf16.mxu0 0
    %653 = vmatpush1.bf16.msra.mxu0 0
    %654 = vmatprep.subr.bf16.mxu0 0
    %655 = vmatpush1.bf16.msra.mxu0 0
    %656 = vmatprep.subr.bf16.mxu0 0
    %657 = vmatpush1.bf16.msra.mxu0 0
    %658 = vmatprep.subr.bf16.mxu0 0
    %659 = vmatpush1.bf16.msra.mxu0 %v548
    %660 = vmatprep.subr.bf16.mxu0 0
    %661 = vmatpush1.bf16.msra.mxu0 %v545
    %662 = vmatprep.subr.bf16.mxu0 0
    %663 = vmatpush2.bf16.msra.mxu0 0
    %664 = vmatprep.subr.bf16.mxu0 0
    %665 = vmatpush2.bf16.msra.mxu0 0
    %666 = vmatprep.subr.bf16.mxu0 0
    %667 = vmatpush2.bf16.msra.mxu0 0
    %668 = vmatprep.subr.bf16.mxu0 0
    %669 = vmatpush2.bf16.msra.mxu0 0
    %670 = vmatprep.subr.bf16.mxu0 0
    %671 = vmatpush2.bf16.msra.mxu0 0
    %672 = vmatprep.subr.bf16.mxu0 0
    %673 = vmatpush2.bf16.msra.mxu0 0
    %674 = vmatprep.subr.bf16.mxu0 0
    %675 = vmatpush2.bf16.msra.mxu0 0
    %676 = vmatprep.subr.bf16.mxu0 0
    %677 = vmatpush2.bf16.msra.mxu0 0
    %678 = vmatprep.mubr.bf16.mxu0 0
    %679 = vmatmul.mubr.bf16.gmra.mxu0 %v588
    %v680 = vpop.f32.mrf.mxu0
    %v681 = vadd.f32 %v560, %v680
    %v682 = vpop.f32.mrf.mxu0
    %v683 = vpop.f32.mrf.mxu0
    %v684 = vadd.f32 %v565, %v683
    %v685 = vpop.f32.mrf.mxu0
    %686 = vmatprep.mubr.bf16.mxu0 0
    %687 = vmatmul.mubr.bf16.gmra.mxu0 %v591
    %v688 = vpop.f32.mrf.mxu0
    %v689 = vadd.f32 %v570, %v688
    %v690 = vpop.f32.mrf.mxu0
    %v691 = vpop.f32.mrf.mxu0
    %v692 = vadd.f32 %v575, %v691
    %v693 = vpop.f32.mrf.mxu0
    %694 = vdwg.mxu0
    %v695 = vmax.f32 %v628, 0.0
    %v696 = vmax.f32 %v630, 0.0
    %v697 = vmax.f32 %v681, 0.0
    %v698 = vmax.f32 %v632, 0.0
    %v699 = vmax.f32 %v634, 0.0
    %v700 = vmax.f32 %v684, 0.0
    %v701 = vmax.f32 %v638, 0.0
    %v702 = vmax.f32 %v640, 0.0
    %v703 = vmax.f32 %v689, 0.0
    %v704 = vmax.f32 %v642, 0.0
    %v705 = vmax.f32 %v644, 0.0
    %v706 = vmax.f32 %v692, 0.0
    %v707 = vpack.c.bf16 %v698, %v695
    %v708 = vpack.c.bf16 %v699, %v696
    %v709 = vpack.c.bf16 %v700, %v697
    %v710 = vpack.c.bf16 %v704, %v701
    %v711 = vpack.c.bf16 %v705, %v702
    %v712 = vpack.c.bf16 %v706, %v703
    %v713 = vld [vmem:[%s1 + $0x40] sm:$0xf]
    %v714 = vld [vmem:[%s1 + $0x44] sm:$0xf]
    %v715 = vld [vmem:[%s1 + $0x48] sm:$0xf]
    %v716 = vld [vmem:[%s1 + $0x4c] sm:$0xf]
    %v717 = vld [vmem:[%s2 + $0x80] sm:$0xff]
    %v718 = vld [vmem:[%s2 + $0x88] sm:$0xff]
    %v719 = vld [vmem:[%s2 + $0x90] sm:$0xff]
    %v720 = vld [vmem:[%s2 + $0x98] sm:$0xff]
    %722 = vset.pattern.permute.xlu0 0
    %723 = vperm.xlu0 %722, %v717
    %v724 = vpop.permute.xlu0 %723
    %727 = vset.pattern.permute.xlu0 0
    %728 = vperm.xlu0 %727, %v718
    %v729 = vpop.permute.xlu0 %728
    %732 = vset.pattern.permute.xlu0 0
    %733 = vperm.xlu0 %732, %v719
    %v734 = vpop.permute.xlu0 %733
    %737 = vset.pattern.permute.xlu0 0
    %738 = vperm.xlu0 %737, %v720
    %v739 = vpop.permute.xlu0 %738
    %v745 = vunpack.c.l.b16 %v713
    %v746 = vunpack.c.l.b16 %v714
    %v747 = vunpack.c.l.b16 %v715
    %v748 = vunpack.c.l.b16 %v716
    %v749 = vpack.c.b16 %v746, %v745
    %v750 = vpack.c.b16 %v748, %v747
    %v752 = vsel %vm94, %v749, 0
    %v755 = vsel %vm94, %v750, 0
    %757 = vmatprep.subr.bf16.mxu0 0
    %758 = vmatpush1.bf16.msra.mxu0 0
    %759 = vmatprep.subr.bf16.mxu0 0
    %760 = vmatpush1.bf16.msra.mxu0 0
    %761 = vmatprep.subr.bf16.mxu0 0
    %762 = vmatpush1.bf16.msra.mxu0 0
    %763 = vmatprep.subr.bf16.mxu0 0
    %764 = vmatpush1.bf16.msra.mxu0 0
    %765 = vmatprep.subr.bf16.mxu0 0
    %766 = vmatpush1.bf16.msra.mxu0 0
    %767 = vmatprep.subr.bf16.mxu0 0
    %768 = vmatpush1.bf16.msra.mxu0 0
    %769 = vmatprep.subr.bf16.mxu0 %v711
    %770 = vmatpush1.bf16.msra.mxu0 %v710
    %771 = vmatprep.subr.bf16.mxu0 %v708
    %772 = vmatpush1.bf16.msra.mxu0 %v707
    %773 = vmatprep.subr.bf16.mxu0 0
    %774 = vmatpush2.bf16.msra.mxu0 0
    %775 = vmatprep.subr.bf16.mxu0 0
    %776 = vmatpush2.bf16.msra.mxu0 0
    %777 = vmatprep.subr.bf16.mxu0 0
    %778 = vmatpush2.bf16.msra.mxu0 0
    %779 = vmatprep.subr.bf16.mxu0 0
    %780 = vmatpush2.bf16.msra.mxu0 0
    %781 = vmatprep.subr.bf16.mxu0 0
    %782 = vmatpush2.bf16.msra.mxu0 0
    %783 = vmatprep.subr.bf16.mxu0 0
    %784 = vmatpush2.bf16.msra.mxu0 0
    %785 = vmatprep.subr.bf16.mxu0 0
    %786 = vmatpush2.bf16.msra.mxu0 0
    %787 = vmatprep.subr.bf16.mxu0 0
    %788 = vmatpush2.bf16.msra.mxu0 0
    %789 = vmatprep.mubr.bf16.mxu0 0
    %790 = vmatmul.mubr.bf16.gmra.mxu0 %v752
    %v791 = vpop.f32.mrf.mxu0
    %v792 = vadd.f32 %v724, %v791
    %v793 = vpop.f32.mrf.mxu0
    %v794 = vadd.f32 %v724, %v793
    %v795 = vpop.f32.mrf.mxu0
    %v796 = vadd.f32 %v729, %v795
    %v797 = vpop.f32.mrf.mxu0
    %v798 = vadd.f32 %v729, %v797
    %799 = vmatprep.mubr.bf16.mxu0 0
    %800 = vmatmul.mubr.bf16.gmra.mxu0 %v755
    %v801 = vpop.f32.mrf.mxu0
    %v802 = vadd.f32 %v734, %v801
    %v803 = vpop.f32.mrf.mxu0
    %v804 = vadd.f32 %v734, %v803
    %v805 = vpop.f32.mrf.mxu0
    %v806 = vadd.f32 %v739, %v805
    %v807 = vpop.f32.mrf.mxu0
    %v808 = vadd.f32 %v739, %v807
    %809 = vdwg.mxu0
    %810 = vmatprep.subr.bf16.mxu0 0
    %811 = vmatpush1.bf16.msra.mxu0 0
    %812 = vmatprep.subr.bf16.mxu0 0
    %813 = vmatpush1.bf16.msra.mxu0 0
    %814 = vmatprep.subr.bf16.mxu0 0
    %815 = vmatpush1.bf16.msra.mxu0 0
    %816 = vmatprep.subr.bf16.mxu0 0
    %817 = vmatpush1.bf16.msra.mxu0 0
    %818 = vmatprep.subr.bf16.mxu0 0
    %819 = vmatpush1.bf16.msra.mxu0 0
    %820 = vmatprep.subr.bf16.mxu0 0
    %821 = vmatpush1.bf16.msra.mxu0 0
    %822 = vmatprep.subr.bf16.mxu0 0
    %823 = vmatpush1.bf16.msra.mxu0 %v712
    %824 = vmatprep.subr.bf16.mxu0 0
    %825 = vmatpush1.bf16.msra.mxu0 %v709
    %826 = vmatprep.subr.bf16.mxu0 0
    %827 = vmatpush2.bf16.msra.mxu0 0
    %828 = vmatprep.subr.bf16.mxu0 0
    %829 = vmatpush2.bf16.msra.mxu0 0
    %830 = vmatprep.subr.bf16.mxu0 0
    %831 = vmatpush2.bf16.msra.mxu0 0
    %832 = vmatprep.subr.bf16.mxu0 0
    %833 = vmatpush2.bf16.msra.mxu0 0
    %834 = vmatprep.subr.bf16.mxu0 0
    %835 = vmatpush2.bf16.msra.mxu0 0
    %836 = vmatprep.subr.bf16.mxu0 0
    %837 = vmatpush2.bf16.msra.mxu0 0
    %838 = vmatprep.subr.bf16.mxu0 0
    %839 = vmatpush2.bf16.msra.mxu0 0
    %840 = vmatprep.subr.bf16.mxu0 0
    %841 = vmatpush2.bf16.msra.mxu0 0
    %842 = vmatprep.mubr.bf16.mxu0 0
    %843 = vmatmul.mubr.bf16.gmra.mxu0 %v752
    %v844 = vpop.f32.mrf.mxu0
    %v845 = vadd.f32 %v724, %v844
    %v846 = vpop.f32.mrf.mxu0
    %v847 = vpop.f32.mrf.mxu0
    %v848 = vadd.f32 %v729, %v847
    %v849 = vpop.f32.mrf.mxu0
    %850 = vmatprep.mubr.bf16.mxu0 0
    %851 = vmatmul.mubr.bf16.gmra.mxu0 %v755
    %v852 = vpop.f32.mrf.mxu0
    %v853 = vadd.f32 %v734, %v852
    %v854 = vpop.f32.mrf.mxu0
    %v855 = vpop.f32.mrf.mxu0
    %v856 = vadd.f32 %v739, %v855
    %v857 = vpop.f32.mrf.mxu0
    %858 = vdwg.mxu0
    %v859 = vmax.f32 %v792, 0.0
    %v860 = vmax.f32 %v794, 0.0
    %v861 = vmax.f32 %v845, 0.0
    %v862 = vmax.f32 %v796, 0.0
    %v863 = vmax.f32 %v798, 0.0
    %v864 = vmax.f32 %v848, 0.0
    %v865 = vmax.f32 %v802, 0.0
    %v866 = vmax.f32 %v804, 0.0
    %v867 = vmax.f32 %v853, 0.0
    %v868 = vmax.f32 %v806, 0.0
    %v869 = vmax.f32 %v808, 0.0
    %v870 = vmax.f32 %v856, 0.0
    %v871 = vpack.c.bf16 %v862, %v859
    %v872 = vpack.c.bf16 %v863, %v860
    %v873 = vpack.c.bf16 %v864, %v861
    %v874 = vpack.c.bf16 %v868, %v865
    %v875 = vpack.c.bf16 %v869, %v866
    %v876 = vpack.c.bf16 %v870, %v867
    %v877 = vld [vmem:[%s1 + $0x50] sm:$0xf]
    %v878 = vld [vmem:[%s1 + $0x54] sm:$0xf]
    %v879 = vld [vmem:[%s1 + $0x58] sm:$0xf]
    %v880 = vld [vmem:[%s1 + $0x5c] sm:$0xf]
    %v881 = vld [vmem:[%s2 + $0xa0] sm:$0xff]
    %v882 = vld [vmem:[%s2 + $0xa8] sm:$0xff]
    %v883 = vld [vmem:[%s2 + $0xb0] sm:$0xff]
    %v884 = vld [vmem:[%s2 + $0xb8] sm:$0xff]
    %886 = vset.pattern.permute.xlu0 0
    %887 = vperm.xlu0 %886, %v881
    %v888 = vpop.permute.xlu0 %887
    %891 = vset.pattern.permute.xlu0 0
    %892 = vperm.xlu0 %891, %v882
    %v893 = vpop.permute.xlu0 %892
    %895 = vset.pattern.permute.xlu0 0
    %896 = vperm.xlu0 %895, %v883
    %v897 = vpop.permute.xlu0 %896
    %899 = vset.pattern.permute.xlu0 0
    %900 = vperm.xlu0 %899, %v884
    %v901 = vpop.permute.xlu0 %900
    %v906 = vunpack.c.l.b16 %v877
    %v907 = vunpack.c.l.b16 %v878
    %v908 = vunpack.c.l.b16 %v879
    %v909 = vunpack.c.l.b16 %v880
    %v910 = vpack.c.b16 %v907, %v906
    %v911 = vpack.c.b16 %v909, %v908
    %v913 = vsel %vm94, %v910, 0
    %v916 = vsel %vm94, %v911, 0
    %918 = vmatprep.subr.bf16.mxu0 0
    %919 = vmatpush1.bf16.msra.mxu0 0
    %920 = vmatprep.subr.bf16.mxu0 0
    %921 = vmatpush1.bf16.msra.mxu0 0
    %922 = vmatprep.subr.bf16.mxu0 0
    %923 = vmatpush1.bf16.msra.mxu0 0
    %924 = vmatprep.subr.bf16.mxu0 0
    %925 = vmatpush1.bf16.msra.mxu0 0
    %926 = vmatprep.subr.bf16.mxu0 0
    %927 = vmatpush1.bf16.msra.mxu0 0
    %928 = vmatprep.subr.bf16.mxu0 0
    %929 = vmatpush1.bf16.msra.mxu0 0
    %930 = vmatprep.subr.bf16.mxu0 %v875
    %931 = vmatpush1.bf16.msra.mxu0 %v874
    %932 = vmatprep.subr.bf16.mxu0 %v872
    %933 = vmatpush1.bf16.msra.mxu0 %v871
    %934 = vmatprep.subr.bf16.mxu0 0
    %935 = vmatpush2.bf16.msra.mxu0 0
    %936 = vmatprep.subr.bf16.mxu0 0
    %937 = vmatpush2.bf16.msra.mxu0 0
    %938 = vmatprep.subr.bf16.mxu0 0
    %939 = vmatpush2.bf16.msra.mxu0 0
    %940 = vmatprep.subr.bf16.mxu0 0
    %941 = vmatpush2.bf16.msra.mxu0 0
    %942 = vmatprep.subr.bf16.mxu0 0
    %943 = vmatpush2.bf16.msra.mxu0 0
    %944 = vmatprep.subr.bf16.mxu0 0
    %945 = vmatpush2.bf16.msra.mxu0 0
    %946 = vmatprep.subr.bf16.mxu0 0
    %947 = vmatpush2.bf16.msra.mxu0 0
    %948 = vmatprep.subr.bf16.mxu0 0
    %949 = vmatpush2.bf16.msra.mxu0 0
    %950 = vmatprep.mubr.bf16.mxu0 0
    %951 = vmatmul.mubr.bf16.gmra.mxu0 %v913
    %v952 = vpop.f32.mrf.mxu0
    %v953 = vadd.f32 %v888, %v952
    %v954 = vpop.f32.mrf.mxu0
    %v955 = vadd.f32 %v888, %v954
    %v956 = vpop.f32.mrf.mxu0
    %v957 = vpop.f32.mrf.mxu0
    %958 = vmatprep.mubr.bf16.mxu0 0
    %959 = vmatmul.mubr.bf16.gmra.mxu0 %v916
    %v960 = vpop.f32.mrf.mxu0
    %v961 = vpop.f32.mrf.mxu0
    %v962 = vpop.f32.mrf.mxu0
    %v963 = vpop.f32.mrf.mxu0
    %964 = vdwg.mxu0
    %965 = vmatprep.subr.bf16.mxu0 0
    %966 = vmatpush1.bf16.msra.mxu0 0
    %967 = vmatprep.subr.bf16.mxu0 0
    %968 = vmatpush1.bf16.msra.mxu0 0
    %969 = vmatprep.subr.bf16.mxu0 0
    %970 = vmatpush1.bf16.msra.mxu0 0
    %971 = vmatprep.subr.bf16.mxu0 0
    %972 = vmatpush1.bf16.msra.mxu0 0
    %973 = vmatprep.subr.bf16.mxu0 0
    %974 = vmatpush1.bf16.msra.mxu0 0
    %975 = vmatprep.subr.bf16.mxu0 0
    %976 = vmatpush1.bf16.msra.mxu0 0
    %977 = vmatprep.subr.bf16.mxu0 0
    %978 = vmatpush1.bf16.msra.mxu0 %v876
    %979 = vmatprep.subr.bf16.mxu0 0
    %980 = vmatpush1.bf16.msra.mxu0 %v873
    %981 = vmatprep.subr.bf16.mxu0 0
    %982 = vmatpush2.bf16.msra.mxu0 0
    %983 = vmatprep.subr.bf16.mxu0 0
    %984 = vmatpush2.bf16.msra.mxu0 0
    %985 = vmatprep.subr.bf16.mxu0 0
    %986 = vmatpush2.bf16.msra.mxu0 0
    %987 = vmatprep.subr.bf16.mxu0 0
    %988 = vmatpush2.bf16.msra.mxu0 0
    %989 = vmatprep.subr.bf16.mxu0 0
    %990 = vmatpush2.bf16.msra.mxu0 0
    %991 = vmatprep.subr.bf16.mxu0 0
    %992 = vmatpush2.bf16.msra.mxu0 0
    %993 = vmatprep.subr.bf16.mxu0 0
    %994 = vmatpush2.bf16.msra.mxu0 0
    %995 = vmatprep.subr.bf16.mxu0 0
    %996 = vmatpush2.bf16.msra.mxu0 0
    %997 = vmatprep.mubr.bf16.mxu0 0
    %998 = vmatmul.mubr.bf16.gmra.mxu0 %v913
    %v999 = vpop.f32.mrf.mxu0
    %v1000 = vadd.f32 %v888, %v999
    %v1001 = vpop.f32.mrf.mxu0
    %v1002 = vpop.f32.mrf.mxu0
    %v1003 = vpop.f32.mrf.mxu0
    %1004 = vmatprep.mubr.bf16.mxu0 0
    %1005 = vmatmul.mubr.bf16.gmra.mxu0 %v916
    %v1006 = vpop.f32.mrf.mxu0
    %v1007 = vpop.f32.mrf.mxu0
    %v1008 = vpop.f32.mrf.mxu0
    %v1009 = vpop.f32.mrf.mxu0
    %1010 = vdwg.mxu0
    %v1011 = vrot.slane %v953, 4
    %v1012 = vmax.f32 %v953, %v1011
    %v1013 = vrot.slane %v1012, 2
    %v1014 = vmax.f32 %v1012, %v1013
    %v1015 = vrot.slane %v1014, 1
    %v1016 = vmax.f32 %v1014, %v1015
    %v1017 = vrot.slane %v955, 4
    %v1018 = vmax.f32 %v955, %v1017
    %v1019 = vrot.slane %v1018, 2
    %v1020 = vmax.f32 %v1018, %v1019
    %v1021 = vrot.slane %v1020, 1
    %v1022 = vmax.f32 %v1020, %v1021
    %v1023 = vrot.slane %v1000, 4
    %v1024 = vmax.f32 %v1000, %v1023
    %v1025 = vrot.slane %v1024, 2
    %v1026 = vmax.f32 %v1024, %v1025
    %v1027 = vrot.slane %v1026, 1
    %v1028 = vmax.f32 %v1026, %v1027
    %v1029 = vsub.f32 %v953, %v1016
    %v1030 = vsub.f32 %v955, %v1022
    %v1031 = vsub.f32 %v1000, %v1028
    %v1032 = vmul.f32 %v1029, 1.442695
    %v1033 = vpow.pop %v1032
    %v1034 = vmul.f32 %v1030, 1.442695
    %v1035 = vpow.pop %v1034
    %v1036 = vmul.f32 %v1031, 1.442695
    %v1037 = vpow.pop %v1036
    %v1038 = vrot.slane %v1033, 4
    %v1039 = vadd.f32 %v1033, %v1038
    %v1040 = vrot.slane %v1039, 2
    %v1041 = vadd.f32 %v1039, %v1040
    %v1042 = vrot.slane %v1041, 1
    %v1043 = vadd.f32 %v1041, %v1042
    %v1044 = vrot.slane %v1035, 4
    %v1045 = vadd.f32 %v1035, %v1044
    %v1046 = vrot.slane %v1045, 2
    %v1047 = vadd.f32 %v1045, %v1046
    %v1048 = vrot.slane %v1047, 1
    %v1049 = vadd.f32 %v1047, %v1048
    %v1050 = vrot.slane %v1037, 4
    %v1051 = vadd.f32 %v1037, %v1050
    %v1052 = vrot.slane %v1051, 2
    %v1053 = vadd.f32 %v1051, %v1052
    %v1054 = vrot.slane %v1053, 1
    %v1055 = vadd.f32 %v1053, %v1054
    %v1056 = vrcp.pop %v1043
    %v1057 = vmul.f32 %v1033, %v1056
    %v1058 = vrcp.pop %v1049
    %v1059 = vmul.f32 %v1035, %v1058
    %v1060 = vrcp.pop %v1055
    %v1061 = vmul.f32 %v1037, %v1060
    %1062 = vst [vmem:[#allocation2] sm:$0xff] %v1057
    %1063 = vst [vmem:[#allocation2 + $0x8] sm:$0xff] %v1059
    %1064 = vst [vmem:[#allocation2 + $0x10] sm:$0xff] %v1061
    // Predicated region
    $region14: #{tpu_custom_call.1} parent=1 // pred_check
      _
    $region15: #{tpu_custom_call.1} parent=1 // pred_check_branch
      %1066 = sbr.rel (0) target = $region17
    $region16: #{tpu_custom_call.1} parent=1 // pred_region
      %s1068 = ssub.s32 384, 384
      %1069 = vsyncadd [#allocation3], %s1068
      %s1071 = sshll.u32 [#allocation2], 4
      %s1072 = int_to_ptr.vmem [resolvable:$true] %s1071
      %1074 = dma.vmem_to_hbm [thread:$0]  %s1072, 384, %s3, [#allocation3]
    $region17: #{tpu_custom_call.1} parent=1 // pred_fallthru
      _
    // Predicated region
    $region18: #{tpu_custom_call.1} parent=1 // pred_check
      _
    $region19: #{tpu_custom_call.1} parent=1 // pred_check_branch
      %1076 = sbr.rel (0) target = $region21
    $region20: #{tpu_custom_call.1} parent=1 // pred_region
      %1077 = dma.done [#allocation3], 384
    $region21: #{tpu_custom_call.1} parent=1 // pred_fallthru
      _
    %1078 = vsyncpa [#allocation3], 1

</llo_original>
